<compile_context>
chip_gen: v6e
topology: v6e:2x2x1
jax: 0.10.0
libtpu: 0.0.40
codegen_flags: <defaults>
</compile_context>

<pallas_src>
import functools

import jax
import jax.numpy as jnp
from jax.experimental import pallas as pl
from jax.experimental.pallas import tpu as pltpu

_MIB = 1024 * 1024


def _cdiv(a, b):
    return -(-a // b)


# ----------------------------------------------------------------------------
# Generation-aware VMEM sizing
# ----------------------------------------------------------------------------
def _vmem_budgets():
    """Returns (vmem_limit_bytes, per-grid-step tile budget in bytes)."""
    try:
        cap = int(pltpu.get_tpu_info().vmem_capacity_bytes)
    except Exception:
        cap = 64 * _MIB  # conservative default (v7x-class per-TC VMEM)
    if cap >= 96 * _MIB:          # v5e / v6e: 128 MiB physical VMEM
        return 96 * _MIB, 64 * _MIB
    return 40 * _MIB, 28 * _MIB   # v7x-class: 64 MiB physical per TC


# ----------------------------------------------------------------------------
# avg-pool kernel
# ----------------------------------------------------------------------------
def _avg_pool_kernel(x_ref, m_ref, o_ref, num_acc, den_acc, *, seq_len, seq_tile):
    # x_ref: (TB, TS, TH), m_ref: (TB, TS), o_ref: (TB, TH)
    # num_acc: (TB, TH) f32 scratch, den_acc: (TB, 1) f32 scratch
    s = pl.program_id(2)

    @pl.when(s == 0)
    def _():
        num_acc[...] = jnp.zeros_like(num_acc)
        den_acc[...] = jnp.zeros_like(den_acc)

    x = x_ref[...]                                  # native dtype (f32 / bf16)
    m = m_ref[...].astype(jnp.float32)              # (TB, TS)

    # Static check: only emit tail-masking code if a partial S chunk exists.
    if seq_len % seq_tile != 0:
        valid = seq_len - s * seq_tile
        keep = jax.lax.broadcasted_iota(jnp.int32, m.shape, 1) < valid
        # Mask BOTH m and x: OOB-padded x may hold NaN/Inf and NaN * 0 != 0.
        m = jnp.where(keep, m, 0.0)
        x = jnp.where(keep[:, :, None], x, 0)

    # Mask-multiply in the activation dtype (exact for 0/1 masks; keeps the
    # VALU slot from saturating with bf16 inputs on v7x), accumulate in f32.
    xm = x * m.astype(x.dtype)[:, :, None]
    num_acc[...] += jnp.sum(xm.astype(jnp.float32), axis=1)     # (TB, TH)
    den_acc[...] += jnp.sum(m, axis=1, keepdims=True)           # (TB, 1)

    @pl.when(s == pl.num_programs(2) - 1)
    def _():
        den = jnp.maximum(den_acc[...], 1e-9)       # guard all-zero-mask rows
        inv = pl.reciprocal(den, approx=False)      # one divide per row
        o_ref[...] = (num_acc[...] * inv).astype(o_ref.dtype)


# ----------------------------------------------------------------------------
# Tiling
# ----------------------------------------------------------------------------
def _batch_tile_candidates(B):
    """Descending batch-tile candidates; each is a multiple of 8 or equals B.

    For B >= 16 the largest candidate is capped so there are ~4+ batch blocks:
    keeps both TensorCores busy on v7x, harmless on single-TC v5e/v6e.
    """
    if B >= 16:
        start = max(8, ((B // 4) // 8) * 8)
    else:
        start = B
    cands = [start]
    v = (start // 8) * 8
    if v == start:
        v -= 8
    while v >= 8:
        cands.append(v)
        v -= 8
    return cands


def _avg_tiling(B, S, H, x_item, m_item, budget):
    """Returns (tb, ts, th): batch / sequence / hidden block sizes."""

    def step_bytes(tb, ts, th):
        x_blk = tb * ts * th * x_item
        m_blk = tb * ts * m_item
        o_blk = tb * th * x_item
        scratch = tb * th * 4 + tb * 128 * 4        # num_acc + lane-padded den_acc
        return 2 * (x_blk + m_blk + o_blk) + scratch

    cands = _batch_tile_candidates(B)

    # Path 1: full S, full H with the largest batch tile that fits the budget.
    for tb in cands:
        if step_bytes(tb, S, H) <= budget:
            ts = S
            # Avoid a degenerate (1,1,1) grid: with a single batch block and a
            # long sequence, split S into ~4 chunks so DMA/compute overlap.
            if _cdiv(B, tb) == 1 and S >= 4 * 128:
                ts = min(S, _cdiv(_cdiv(S, 4), 128) * 128)
            return tb, ts, H

    # Path 2: chunk S (multiples of 128), keep full H.
    if S >= 128:
        for tb in cands:
            fixed = 2 * (tb * H * x_item) + tb * H * 4 + tb * 128 * 4
            per_s = 2 * tb * (H * x_item + m_item)
            if budget > fixed:
                ts = ((budget - fixed) // per_s // 128) * 128
                if ts >= 128:
                    return tb, ts, H

    # Path 3: chunk H as well (very large hidden dims).
    if H >= 128:
        tb = cands[-1]
        ts = 128 if S >= 128 else S
        fixed = 2 * tb * ts * m_item + tb * 128 * 4
        per_th = 2 * tb * ts * x_item + 2 * tb * x_item + tb * 4
        if budget > fixed:
            th = ((budget - fixed) // per_th // 128) * 128
            if th >= 128:
                return tb, ts, th

    # TODO(synk): pathological shapes (e.g. S and H both < 128 but a single
    # (tb, S, H) block still exceeds the budget); rely on vmem_limit headroom.
    return cands[-1], (128 if S >= 128 else S), (128 if H >= 128 else H)


# ----------------------------------------------------------------------------
# Wrapper (Pooler.forward equivalent)
# ----------------------------------------------------------------------------
def pooler(last_hidden_states, attention_mask, pooler_type="avg"):
    """last_hidden_states: [B, S, H]; attention_mask: [B, S]; returns [B, 1, H]."""
    B, S, H = last_hidden_states.shape
    dtype = last_hidden_states.dtype

    if pooler_type == "cls":
        # Pure data movement: XLA's strided copy is already at the HBM floor.
        return last_hidden_states[:, 0:1, :]

    if pooler_type != "avg":
        raise ValueError(f"unsupported pooler_type: {pooler_type}")

    # Keep the mask in its native dtype when it's 4-byte (f32/int32); only
    # widen sub-4-byte / bool masks so the (tb, ts) block layout stays simple.
    if jnp.dtype(attention_mask.dtype).itemsize < 4 or attention_mask.dtype == jnp.bool_:
        attention_mask = attention_mask.astype(jnp.float32)

    x_item = jnp.dtype(dtype).itemsize
    m_item = jnp.dtype(attention_mask.dtype).itemsize
    vmem_limit, vmem_budget = _vmem_budgets()
    tb, ts, th = _avg_tiling(B, S, H, x_item, m_item, vmem_budget)
    grid = (_cdiv(B, tb), _cdiv(H, th), _cdiv(S, ts))

    kernel = functools.partial(_avg_pool_kernel, seq_len=S, seq_tile=ts)

    out2d = pl.pallas_call(
        kernel,
        out_shape=jax.ShapeDtypeStruct((B, H), dtype),
        grid_spec=pltpu.PrefetchScalarGridSpec(
            num_scalar_prefetch=0,
            grid=grid,
            in_specs=[
                pl.BlockSpec((tb, ts, th), lambda b, h, s: (b, s, h)),
                pl.BlockSpec((tb, ts), lambda b, h, s: (b, s)),
            ],
            out_specs=pl.BlockSpec((tb, th), lambda b, h, s: (b, h)),
            scratch_shapes=[
                pltpu.VMEM((tb, th), jnp.float32),   # numerator accumulator
                pltpu.VMEM((tb, 1), jnp.float32),    # denominator accumulator
            ],
        ),
        compiler_params=pltpu.CompilerParams(
            dimension_semantics=("parallel", "parallel", "arbitrary"),
            vmem_limit_bytes=vmem_limit,
        ),
    )(last_hidden_states, attention_mask)
    return out2d[:, None, :]


# ----------------------------------------------------------------------------
# Reference + test
# ----------------------------------------------------------------------------
def _reference(last_hidden_states, attention_mask, pooler_type):
    if pooler_type == "cls":
        return last_hidden_states[:, 0:1]
    m = attention_mask.astype(last_hidden_states.dtype)
    num = (last_hidden_states * m[:, :, None]).sum(1)
    den = m.sum(-1)[:, None]
    return (num / den)[:, None, :]


if __name__ == "__main__":
    key = jax.random.PRNGKey(0)
    k1, k2 = jax.random.split(key)

    B, S, H = 2, 8, 32
    x = jax.random.normal(k1, (B, S, H), dtype=jnp.float32)
    # deterministic 0/1 attention mask with at least one valid token per row
    mask = (jax.random.uniform(k2, (B, S)) > 0.3).astype(jnp.float32)
    mask = mask.at[:, 0].set(1.0)

    ok = True
    for ptype in ("avg", "cls"):
        out = pooler(x, mask, pooler_type=ptype)
        out = jax.block_until_ready(out)
        ref = _reference(x, mask, ptype)
        if out.shape != (B, 1, H):
            ok = False
        if not jnp.allclose(out, ref, atol=1e-5, rtol=1e-5):
            ok = False

    print("KERNEL_OK" if ok else "KERNEL_MISMATCH")
</pallas_src>

<mosaic_0001>
module attributes {stable_mosaic.version = 11 : i64} {
  func.func @_avg_pool_kernel(%arg0: i32, %arg1: i32, %arg2: i32, %arg3: memref<2x8x32xf32, #tpu.memory_space<vmem>>, %arg4: memref<2x8xf32, #tpu.memory_space<vmem>>, %arg5: memref<2x32xf32, #tpu.memory_space<vmem>>, %arg6: memref<2x32xf32, #tpu.memory_space<vmem>>, %arg7: memref<2x1xf32, #tpu.memory_space<vmem>>) attributes {dimension_semantics = [#tpu.dimension_semantics<parallel>, #tpu.dimension_semantics<parallel>, #tpu.dimension_semantics<arbitrary>], iteration_bounds = array<i64: 1, 1, 1>, scalar_prefetch = 0 : i64, scratch_operands = 2 : i64, tpu.core_type = #tpu.core_type<tc>, window_params = [{transform_indices = @transform_0, window_bounds = array<i64: 2, 8, 32>}, {transform_indices = @transform_1, window_bounds = array<i64: 2, 8>}, {transform_indices = @transform_2, window_bounds = array<i64: 2, 32>}]} {
    %c0_i32 = arith.constant 0 : i32
    %0 = arith.cmpi eq, %arg2, %c0_i32 : i32
    %1 = arith.extui %0 : i1 to i32
    %c0_i32_0 = arith.constant 0 : i32
    %2 = arith.cmpi ne, %1, %c0_i32_0 : i32
    scf.if %2 {
      %cst_16 = arith.constant 0.000000e+00 : f32
      %20 = vector.broadcast %cst_16 : f32 to vector<2x32xf32>
      %c0_17 = arith.constant 0 : index
      %c0_18 = arith.constant 0 : index
      %21 = vector.load %arg6[%c0_17, %c0_18] : memref<2x32xf32, #tpu.memory_space<vmem>>, vector<2x32xf32>
      tpu.vector_store %arg6[%c0_17, %c0_18], %20 {strides = array<i32>} : memref<2x32xf32, #tpu.memory_space<vmem>>, vector<2x32xf32>,
      %cst_19 = arith.constant 0.000000e+00 : f32
      %22 = vector.broadcast %cst_19 : f32 to vector<2x1xf32>
      %c0_20 = arith.constant 0 : index
      %c0_21 = arith.constant 0 : index
      %23 = vector.load %arg7[%c0_20, %c0_21] : memref<2x1xf32, #tpu.memory_space<vmem>>, vector<2x1xf32>
      tpu.vector_store %arg7[%c0_20, %c0_21], %22 {strides = array<i32>} : memref<2x1xf32, #tpu.memory_space<vmem>>, vector<2x1xf32>,
    } else {
    }
    %c0 = arith.constant 0 : index
    %c0_1 = arith.constant 0 : index
    %c0_2 = arith.constant 0 : index
    %3 = vector.load %arg3[%c0, %c0_1, %c0_2] : memref<2x8x32xf32, #tpu.memory_space<vmem>>, vector<2x8x32xf32>
    %c0_3 = arith.constant 0 : index
    %c0_4 = arith.constant 0 : index
    %4 = vector.load %arg4[%c0_3, %c0_4] : memref<2x8xf32, #tpu.memory_space<vmem>>, vector<2x8xf32>
    %5 = vector.shape_cast %4 : vector<2x8xf32> to vector<2x8x1xf32>
    %6 = vector.broadcast %5 : vector<2x8x1xf32> to vector<2x8x32xf32>
    %7 = arith.mulf %3, %6 : vector<2x8x32xf32>
    %c0_5 = arith.constant 0 : index
    %c0_6 = arith.constant 0 : index
    %8 = vector.load %arg6[%c0_5, %c0_6] : memref<2x32xf32, #tpu.memory_space<vmem>>, vector<2x32xf32>
    %cst = arith.constant dense<0.000000e+00> : vector<2x32xf32>
    %9 = vector.multi_reduction <add>, %7, %cst [1] : vector<2x8x32xf32> to vector<2x32xf32>
    %10 = arith.addf %8, %9 : vector<2x32xf32>
    %c0_7 = arith.constant 0 : index
    %c0_8 = arith.constant 0 : index
    %11 = vector.load %arg6[%c0_7, %c0_8] : memref<2x32xf32, #tpu.memory_space<vmem>>, vector<2x32xf32>
    tpu.vector_store %arg6[%c0_7, %c0_8], %10 {strides = array<i32>} : memref<2x32xf32, #tpu.memory_space<vmem>>, vector<2x32xf32>,
    %c0_9 = arith.constant 0 : index
    %c0_10 = arith.constant 0 : index
    %12 = vector.load %arg7[%c0_9, %c0_10] : memref<2x1xf32, #tpu.memory_space<vmem>>, vector<2x1xf32>
    %cst_11 = arith.constant dense<0.000000e+00> : vector<2xf32>
    %13 = vector.multi_reduction <add>, %4, %cst_11 [1] : vector<2x8xf32> to vector<2xf32>
    %14 = vector.shape_cast %13 : vector<2xf32> to vector<2x1xf32>
    %15 = arith.addf %12, %14 : vector<2x1xf32>
    %c0_12 = arith.constant 0 : index
    %c0_13 = arith.constant 0 : index
    %16 = vector.load %arg7[%c0_12, %c0_13] : memref<2x1xf32, #tpu.memory_space<vmem>>, vector<2x1xf32>
    tpu.vector_store %arg7[%c0_12, %c0_13], %15 {strides = array<i32>} : memref<2x1xf32, #tpu.memory_space<vmem>>, vector<2x1xf32>,
    %c0_i32_14 = arith.constant 0 : i32
    %17 = arith.cmpi eq, %arg2, %c0_i32_14 : i32
    %18 = arith.extui %17 : i1 to i32
    %c0_i32_15 = arith.constant 0 : i32
    %19 = arith.cmpi ne, %18, %c0_i32_15 : i32
    scf.if %19 {
      %c0_16 = arith.constant 0 : index
      %c0_17 = arith.constant 0 : index
      %20 = vector.load %arg7[%c0_16, %c0_17] : memref<2x1xf32, #tpu.memory_space<vmem>>, vector<2x1xf32>
      %cst_18 = arith.constant 9.99999971E-10 : f32
      %21 = vector.broadcast %cst_18 : f32 to vector<2x1xf32>
      %22 = arith.maximumf %20, %21 : vector<2x1xf32>
      %23 = tpu.reciprocal %22 : vector<2x1xf32> -> vector<2x1xf32>
      %c0_19 = arith.constant 0 : index
      %c0_20 = arith.constant 0 : index
      %24 = vector.load %arg6[%c0_19, %c0_20] : memref<2x32xf32, #tpu.memory_space<vmem>>, vector<2x32xf32>
      %25 = vector.broadcast %23 : vector<2x1xf32> to vector<2x32xf32>
      %26 = arith.mulf %24, %25 : vector<2x32xf32>
      %c0_21 = arith.constant 0 : index
      %c0_22 = arith.constant 0 : index
      %27 = vector.load %arg5[%c0_21, %c0_22] : memref<2x32xf32, #tpu.memory_space<vmem>>, vector<2x32xf32>
      tpu.vector_store %arg5[%c0_21, %c0_22], %26 {strides = array<i32>} : memref<2x32xf32, #tpu.memory_space<vmem>>, vector<2x32xf32>,
    } else {
    }
    return
  }
  func.func @transform_0(%arg0: i32, %arg1: i32, %arg2: i32) -> (i32, i32, i32) {
    %c0_i32 = arith.constant 0 : i32
    return %arg0, %arg2, %arg1 : i32, i32, i32
  }
  func.func @transform_1(%arg0: i32, %arg1: i32, %arg2: i32) -> (i32, i32) {
    %c0_i32 = arith.constant 0 : i32
    return %arg0, %arg2 : i32, i32
  }
  func.func @transform_2(%arg0: i32, %arg1: i32, %arg2: i32) -> (i32, i32) {
    %c0_i32 = arith.constant 0 : i32
    return %arg0, %arg1 : i32, i32
  }
}

</mosaic_0001>

<llo_original>
// kernel: tpu_custom_call.1
$region0: #{tpu_custom_call.1}
  #allocation0 [shape = 'u32[]', space=smem, size = 0x4, offset = 0x4, fixed_abs, tag = 'smem constant byte address 0x4 - core index']
  #allocation1 [shape = 'u32[144,128]{1,0:T(1,128)}', space=vmem, size = 0x12000, scoped, tag = 'internal scratch']
  #allocation2 [shape = 'f32[2,32]{1,0:T(2,128)}', space=vmem, size = 0x400, scoped, tag = 'scratch operand']
  #allocation3 [shape = 'f32[2,1]{1,0:T(2,128)}', space=vmem, size = 0x400, scoped, tag = 'scratch operand']
  %s0 = inlined_call_operand.hbm [shape: f32[2,8,32], index: 0, kind: input, shape index: {}]
  %s1 = inlined_call_operand.hbm [shape: f32[2,8], index: 1, kind: input, shape index: {}]
  %s2 = inlined_call_operand.hbm [shape: f32[2,32], index: 2, kind: output, shape index: {}]
  %s3 = sld [smem:[#allocation0]]
  $region34: #{tpu_custom_call.1} parent=0
    _
  %s5 = ssub.s32 1, %s3
  %s6 = scalar_select 0, %s5, %s3
  $region1: #{tpu_custom_call.1} parent=0
    #allocation4 [shape = 'u8[8192]{0}', space=vmem, size = 0x2000, scoped, tag = 'input window, operand 0, single buffered']
    #allocation5 [shape = 's32[1]{0}', space=sflag, size = 0x4, scoped, tag = 'scoped memory for tpu_custom_call.1']
    #allocation6 [shape = 's32[1]{0}', space=sflag, size = 0x4, scoped, tag = 'scoped memory for tpu_custom_call.1']
    #allocation7 [shape = 'u8[1024]{0}', space=vmem, size = 0x400, scoped, tag = 'input window, operand 1, single buffered']
    #allocation8 [shape = 's32[1]{0}', space=sflag, size = 0x4, scoped, tag = 'scoped memory for tpu_custom_call.1']
    #allocation9 [shape = 'u8[1024]{0}', space=vmem, size = 0x400, scoped, tag = 'output window, operand 0, single buffered']
    %7 = vsyncpa [#allocation5], 0
    %8 = vsyncpa [#allocation8], 0
    %9 = vsyncpa [#allocation6], 0
    // Predicated region
    $region2: #{tpu_custom_call.1} parent=1 // pred_check
      _
    $region3: #{tpu_custom_call.1} parent=1 // pred_check_branch
      %11 = sbr.rel (0) target = $region5
    $region4: #{tpu_custom_call.1} parent=1 // pred_region
      %s13 = ssub.s32 256, 256
      %14 = vsyncadd [#allocation5], %s13
      %s15 = sshll.u32 [#allocation4], 4
      %s16 = int_to_ptr.vmem [resolvable:$true] %s15
      %21 = dma.hbm_to_vmem [thread:$0]  %s0, 256, %s16, [#allocation5], 128, 128, 8
    $region5: #{tpu_custom_call.1} parent=1 // pred_fallthru
      _
    // Predicated region
    $region6: #{tpu_custom_call.1} parent=1 // pred_check
      _
    $region7: #{tpu_custom_call.1} parent=1 // pred_check_branch
      %23 = sbr.rel (0) target = $region9
    $region8: #{tpu_custom_call.1} parent=1 // pred_region
      %s25 = ssub.s32 32, 32
      %26 = vsyncadd [#allocation8], %s25
      %s28 = sshll.u32 [#allocation7], 4
      %s29 = int_to_ptr.vmem [resolvable:$true] %s28
      %31 = dma.hbm_to_vmem [thread:$0]  %s1, 32, %s29, [#allocation8]
    $region9: #{tpu_custom_call.1} parent=1 // pred_fallthru
      _
    // Predicated region
    $region10: #{tpu_custom_call.1} parent=1 // pred_check
      _
    $region11: #{tpu_custom_call.1} parent=1 // pred_check_branch
      %33 = sbr.rel (0) target = $region13
    $region12: #{tpu_custom_call.1} parent=1 // pred_region
      %34 = dma.done [#allocation5], 256
    $region13: #{tpu_custom_call.1} parent=1 // pred_fallthru
      _
    // Predicated region
    $region14: #{tpu_custom_call.1} parent=1 // pred_check
      _
    $region15: #{tpu_custom_call.1} parent=1 // pred_check_branch
      %36 = sbr.rel (0) target = $region17
    $region16: #{tpu_custom_call.1} parent=1 // pred_region
      %37 = dma.done [#allocation8], 32
    $region17: #{tpu_custom_call.1} parent=1 // pred_fallthru
      _
    %p38 = scmp.eq.s32.totalorder 0, 0
    // Predicated region
    $region18: #{tpu_custom_call.1} parent=1 // pred_check
      %p39 = pneg %p38
    $region19: #{tpu_custom_call.1} parent=1 // pred_check_branch
      %41 = sbr.rel (%p39) target = $region21
    $region20: #{tpu_custom_call.1} parent=1 // pred_region
      %vm42 = vcmask 254976
      %43 = vst.msk [vmem:[#allocation2] sm:$0x3] %vm42, 0.0
      %vm44 = vcmask 1024
      %45 = vst.msk [vmem:[#allocation3] sm:$0x3] %vm44, 0.0
    $region21: #{tpu_custom_call.1} parent=1 // pred_fallthru
      _
    %v46 = vld [vmem:[#allocation4] sm:$0xff]
    %v47 = vld [vmem:[#allocation4 + $0x8] sm:$0xff]
    %v48 = vld [vmem:[#allocation7] sm:$0x3]
    %v49 = vlaneseq
    %v50 = vshrl.u32 %v49, 7
    %v51 = vsub.s32 0, %v50
    %v52 = vrot.slane %v48, %v51
    %54 = vbcast.lane.b32.xlu0 %v52, 256
    %v55 = vpop.permute.xlu0 %54
    %v56 = vlaneseq
    %v57 = vshrl.u32 %v56, 7
    %v58 = vsub.s32 1, %v57
    %v59 = vrot.slane %v48, %v58
    %61 = vbcast.lane.b32.xlu0 %v59, 256
    %v62 = vpop.permute.xlu0 %61
    %v63 = vmul.f32 %v46, %v55
    %v64 = vmul.f32 %v47, %v62
    %v65 = vld [vmem:[#allocation2] sm:$0x3]
    %vm66 = vcmask 261120
    %v67 = vsel %vm66, %v63, 0.0
    %v68 = vrot.slane %v67, 4
    %v69 = vadd.f32 %v67, %v68
    %v70 = vrot.slane %v69, 2
    %v71 = vadd.f32 %v69, %v70
    %v72 = vrot.slane %v71, 1
    %v73 = vadd.f32 %v71, %v72
    %v74 = vsel %vm66, %v64, 0.0
    %v75 = vrot.slane %v74, 4
    %v76 = vadd.f32 %v74, %v75
    %v77 = vrot.slane %v76, 2
    %v78 = vadd.f32 %v76, %v77
    %v79 = vrot.slane %v78, 1
    %v80 = vadd.f32 %v78, %v79
    %vm83 = vcmask 1041409
    %v84 = vsel %vm83, %v80, %v73
    %v86 = vadd.f32 %v65, %v84
    %vm87 = vcmask 254976
    %88 = vst.msk [vmem:[#allocation2] sm:$0x3] %vm87, %v86
    %v89 = vld [vmem:[#allocation3] sm:$0x3]
    %vm90 = vcmask 58368
    %v91 = vsel %vm90, %v48, 0.0
    %92 = vadd.xlane.f32.xlu0 %v91
    %v93 = vpop.xlane.xlu0 %92
    %v94 = vadd.f32 %v89, %v93
    %vm95 = vcmask 1024
    %96 = vst.msk [vmem:[#allocation3] sm:$0x3] %vm95, %v94
    // Predicated region
    $region22: #{tpu_custom_call.1} parent=1 // pred_check
      %p97 = pneg %p38
    $region23: #{tpu_custom_call.1} parent=1 // pred_check_branch
      %99 = sbr.rel (%p97) target = $region25
    $region24: #{tpu_custom_call.1} parent=1 // pred_region
      %v100 = vld [vmem:[#allocation3] sm:$0x3]
      %v101 = vmax.f32 %v100, 1e-09
      %v102 = vrcp.pop %v101
      %v103 = vld [vmem:[#allocation2] sm:$0x3]
      %105 = vset.pattern.permute.xlu0 0
      %106 = vperm.xlu0 %105, %v102
      %v107 = vpop.permute.xlu0 %106
      %v109 = vmul.f32 %v103, %v107
      %110 = vst.msk [vmem:[#allocation9] sm:$0x3] %vm87, %v109
    $region25: #{tpu_custom_call.1} parent=1 // pred_fallthru
      _
    // Predicated region
    $region26: #{tpu_custom_call.1} parent=1 // pred_check
      _
    $region27: #{tpu_custom_call.1} parent=1 // pred_check_branch
      %112 = sbr.rel (0) target = $region29
    $region28: #{tpu_custom_call.1} parent=1 // pred_region
      %s114 = ssub.s32 32, 32
      %115 = vsyncadd [#allocation6], %s114
      %s117 = sshll.u32 [#allocation9], 4
      %s118 = int_to_ptr.vmem [resolvable:$true] %s117
      %120 = dma.vmem_to_hbm [thread:$0]  %s118, 32, %s2, [#allocation6]
    $region29: #{tpu_custom_call.1} parent=1 // pred_fallthru
      _
    // Predicated region
    $region30: #{tpu_custom_call.1} parent=1 // pred_check
      _
    $region31: #{tpu_custom_call.1} parent=1 // pred_check_branch
      %122 = sbr.rel (0) target = $region33
    $region32: #{tpu_custom_call.1} parent=1 // pred_region
      %123 = dma.done [#allocation6], 32
    $region33: #{tpu_custom_call.1} parent=1 // pred_fallthru
      _
    %124 = vsyncpa [#allocation5], 1
    %125 = vsyncpa [#allocation8], 1
    %126 = vsyncpa [#allocation6], 1

</llo_original>
